<compile_context>
chip_gen: v6e
topology: v6e:2x2x1
jax: 0.10.0
libtpu: 0.0.40
codegen_flags: <defaults>
</compile_context>

<pallas_src>
import math

import jax
import jax.numpy as jnp
from jax.experimental import pallas as pl
from jax.experimental.pallas import tpu as pltpu


_MIN_ROW_BLOCKS = 4                      # keep pipeline busy + both v7x TCs fed
_MULTI_BLOCK_THRESHOLD_BYTES = 4 << 20   # below this, a single block is fine


def _make_kernel(compute_dtype):
    def kernel(x_ref, gamma_ref, o_ref):
        # Pure VPU elementwise multiply; gamma (1, tile_d) broadcasts over sublanes.
        x = x_ref[...].astype(compute_dtype)
        g = gamma_ref[...].astype(compute_dtype)
        o_ref[...] = (x * g).astype(o_ref.dtype)
    return kernel


def _row_multiple(dtype) -> int:
    # Sublane packing minimum: 8 rows for 4-byte dtypes, 16 for 2-byte, 32 for 1-byte.
    itemsize = jnp.dtype(dtype).itemsize
    return max(8, 32 // max(itemsize, 1))


def _vmem_params():
    """Generation-aware (block budget, scoped vmem limit) in bytes."""
    cap = 64 << 20   # conservative default = v7x per-TC physical VMEM
    try:
        info = pltpu.get_tpu_info()
        cap = int(getattr(info, "vmem_capacity_bytes", cap)) or cap
    except Exception:
        pass
    # Double-buffered in+out blocks get ~1/3 of physical VMEM, capped at 48 MiB:
    #   v5e/v6e (128 MiB) -> ~42 MiB of blocks; v7x (64 MiB) -> ~21 MiB.
    budget = max(12 << 20, min(cap // 3, 48 << 20))
    limit = int(min(cap, budget + (8 << 20)))
    return budget, limit


def _choose_tiles(rows, d, x_itemsize, out_itemsize, row_mult, budget):
    per_elem = 2 * (x_itemsize + out_itemsize)        # double-buffered in + out
    max_block_elems = max(budget // per_elem, row_mult * 128)

    if d * row_mult <= max_block_elems:
        tile_d = d                                    # full lane extent: always legal
    else:
        # D is huge: tile the lane dimension in multiples of 128.
        tile_d = min(d, max(128, ((max_block_elems // row_mult) // 128) * 128))

    # Row tile from the VMEM budget (multiple of the sublane packing factor).
    tile_rows = max(row_mult, ((max_block_elems // tile_d) // row_mult) * row_mult)

    total_bytes = rows * d * (x_itemsize + out_itemsize)
    if total_bytes > _MULTI_BLOCK_THRESHOLD_BYTES:
        # Guarantee a multi-block row axis: pipelined DMA overlap + v7x TC split.
        per_block = max(row_mult,
                        (pl.cdiv(rows, _MIN_ROW_BLOCKS) // row_mult) * row_mult)
        tile_rows = min(tile_rows, per_block)
    if tile_rows >= rows:
        tile_rows = rows       # full row extent: always a legal block shape
    return tile_rows, tile_d


def _scale_2d(x2d, gamma_row, out_dtype, compute_dtype):
    """y2d = x2d * gamma_row with gamma_row of shape (1, d)."""
    rows, d = x2d.shape
    row_mult = _row_multiple(x2d.dtype)
    budget, vmem_limit = _vmem_params()
    tile_rows, tile_d = _choose_tiles(
        rows, d,
        jnp.dtype(x2d.dtype).itemsize, jnp.dtype(out_dtype).itemsize,
        row_mult, budget)

    row_blocks = pl.cdiv(rows, tile_rows)
    d_blocks = pl.cdiv(d, tile_d)
    kernel = _make_kernel(compute_dtype)

    if d_blocks == 1:
        grid = (row_blocks,)
        in_specs = [
            pl.BlockSpec((tile_rows, tile_d), lambda i: (i, 0)),
            pl.BlockSpec((1, tile_d), lambda i: (0, 0)),      # constant -> no re-DMA
        ]
        out_specs = pl.BlockSpec((tile_rows, tile_d), lambda i: (i, 0))
        dims = ("parallel",)
    else:
        # Huge-D path: lane axis is the OUTER grid axis so gamma's block index is
        # constant over the inner row loop (gamma DMA'd once per lane block).
        grid = (d_blocks, row_blocks)
        in_specs = [
            pl.BlockSpec((tile_rows, tile_d), lambda j, i: (i, j)),
            pl.BlockSpec((1, tile_d), lambda j, i: (0, j)),
        ]
        out_specs = pl.BlockSpec((tile_rows, tile_d), lambda j, i: (i, j))
        dims = ("parallel", "parallel")

    return pl.pallas_call(
        kernel,
        out_shape=jax.ShapeDtypeStruct((rows, d), out_dtype),
        grid_spec=pltpu.PrefetchScalarGridSpec(
            num_scalar_prefetch=0,
            grid=grid,
            in_specs=in_specs,
            out_specs=out_specs,
        ),
        compiler_params=pltpu.CompilerParams(
            dimension_semantics=dims,
            vmem_limit_bytes=vmem_limit,
        ),
    )(x2d, gamma_row)


def lab_layer_scale(x: jax.Array, gamma: jax.Array, out_dtype=None) -> jax.Array:
    """y = x * gamma, gamma of shape (dim,) broadcast over the last axis of x.

    out_dtype=None matches PyTorch promotion (bf16 x * f32 gamma -> f32 y); pass
    out_dtype=x.dtype to keep bf16 output and ~1.5x less HBM write traffic.
    """
    orig_shape = x.shape
    dim = orig_shape[-1]
    assert gamma.shape == (dim,), f"gamma must have shape ({dim},), got {gamma.shape}"

    if out_dtype is None:
        out_dtype = jnp.promote_types(x.dtype, gamma.dtype)
    out_dtype = jnp.dtype(out_dtype)

    # Native 16-bit multiply when in/out are both 16-bit (bf16 VPU on v6e/v7x;
    # Mosaic upcasts internally on v5e), otherwise compute in f32.
    if x.dtype == out_dtype and out_dtype.itemsize == 2:
        compute_dtype = out_dtype
    else:
        compute_dtype = jnp.float32
    gamma_c = gamma.astype(compute_dtype)

    rows = math.prod(orig_shape[:-1]) if len(orig_shape) > 1 else 1
    rows = max(rows, 1)
    x2d = x.reshape(rows, dim)

    if dim >= 128:
        out2d = _scale_2d(x2d, gamma_c.reshape(1, dim), out_dtype, compute_dtype)
        return out2d.reshape(orig_shape)

    # --- D < 128: present a lane-dense (multiple-of-128) last dimension ---
    lane = dim * (128 // math.gcd(dim, 128))     # lcm(dim, 128)
    repeat = lane // dim
    gamma_tiled = jnp.tile(gamma_c, repeat).reshape(1, lane)

    rows_main = (rows // repeat) * repeat
    if rows_main == rows:
        # Whole tensor packs lane-dense.
        out2d = _scale_2d(x2d.reshape(rows // repeat, lane), gamma_tiled,
                          out_dtype, compute_dtype)
        return out2d.reshape(orig_shape)

    if rows_main == 0:
        # Tiny tensor (< repeat rows): narrow-lane path is fine.
        out2d = _scale_2d(x2d, gamma_c.reshape(1, dim), out_dtype, compute_dtype)
        return out2d.reshape(orig_shape)

    # Bulk of the rows lane-dense; only the tiny ragged tail (< repeat <= 128 rows)
    # takes the masked narrow-lane path.
    out_main = _scale_2d(x2d[:rows_main].reshape(rows_main // repeat, lane),
                         gamma_tiled, out_dtype, compute_dtype)
    out_tail = _scale_2d(x2d[rows_main:], gamma_c.reshape(1, dim),
                         out_dtype, compute_dtype)
    out2d = jnp.concatenate([out_main.reshape(rows_main, dim), out_tail], axis=0)
    return out2d.reshape(orig_shape)


if __name__ == "__main__":
    key = jax.random.PRNGKey(0)
    init_values = 1e-5

    # Typical transformer usage: (batch, seq, hidden)
    B, S, D = 2, 8, 32
    x = jax.random.normal(key, (B, S, D), dtype=jnp.float32)
    gamma = init_values * jnp.ones((D,), dtype=jnp.float32)   # nn.Parameter init

    y = jax.block_until_ready(lab_layer_scale(x, gamma))
    y_ref = x * gamma
    assert y.shape == x.shape and y.dtype == x.dtype
    assert jnp.allclose(y, y_ref, rtol=1e-6, atol=1e-6)

    # Ragged-rows case for D < 128: main lane-dense path + tiny narrow tail.
    x2 = jax.random.normal(jax.random.PRNGKey(1), (3, 5, D), dtype=jnp.float32)
    y2 = jax.block_until_ready(lab_layer_scale(x2, gamma))
    assert jnp.allclose(y2, x2 * gamma, rtol=1e-6, atol=1e-6)

    # bf16 activations with bf16 output override (native 16-bit multiply path).
    D3 = 128
    x3 = jax.random.normal(jax.random.PRNGKey(2), (2, 8, D3), dtype=jnp.bfloat16)
    gamma3 = init_values * jnp.ones((D3,), dtype=jnp.float32)
    y3 = jax.block_until_ready(lab_layer_scale(x3, gamma3, out_dtype=jnp.bfloat16))
    y3_ref = (x3.astype(jnp.float32) * gamma3).astype(jnp.bfloat16)
    assert y3.dtype == jnp.bfloat16
    assert jnp.allclose(y3.astype(jnp.float32), y3_ref.astype(jnp.float32),
                        rtol=5e-2, atol=1e-8)

    print("KERNEL_OK")
</pallas_src>

<mosaic_0001>
module attributes {stable_mosaic.version = 11 : i64} {
  func.func @kernel(%arg0: i32, %arg1: memref<4x128xf32, #tpu.memory_space<vmem>>, %arg2: memref<1x128xf32, #tpu.memory_space<vmem>>, %arg3: memref<4x128xf32, #tpu.memory_space<vmem>>) attributes {dimension_semantics = [#tpu.dimension_semantics<parallel>], iteration_bounds = array<i64: 1>, scalar_prefetch = 0 : i64, scratch_operands = 0 : i64, tpu.core_type = #tpu.core_type<tc>, window_params = [{transform_indices = @transform_0, window_bounds = array<i64: 4, 128>}, {pipeline_mode = #tpu.pipeline_mode<synchronous>, transform_indices = @transform_1, window_bounds = array<i64: 1, 128>}, {transform_indices = @transform_2, window_bounds = array<i64: 4, 128>}]} {
    %c0 = arith.constant 0 : index
    %c0_0 = arith.constant 0 : index
    %0 = vector.load %arg1[%c0, %c0_0] : memref<4x128xf32, #tpu.memory_space<vmem>>, vector<4x128xf32>
    %c0_1 = arith.constant 0 : index
    %c0_2 = arith.constant 0 : index
    %1 = vector.load %arg2[%c0_1, %c0_2] : memref<1x128xf32, #tpu.memory_space<vmem>>, vector<1x128xf32>
    %2 = vector.broadcast %1 : vector<1x128xf32> to vector<4x128xf32>
    %3 = arith.mulf %0, %2 : vector<4x128xf32>
    %c0_3 = arith.constant 0 : index
    %c0_4 = arith.constant 0 : index
    %4 = vector.load %arg3[%c0_3, %c0_4] : memref<4x128xf32, #tpu.memory_space<vmem>>, vector<4x128xf32>
    tpu.vector_store %arg3[%c0_3, %c0_4], %3 {strides = array<i32>} : memref<4x128xf32, #tpu.memory_space<vmem>>, vector<4x128xf32>,
    return
  }
  func.func @transform_0(%arg0: i32) -> (i32, i32) {
    %c0_i32 = arith.constant 0 : i32
    %c0_i32_0 = arith.constant 0 : i32
    return %arg0, %c0_i32 : i32, i32
  }
  func.func @transform_1(%arg0: i32) -> (i32, i32) {
    %c0_i32 = arith.constant 0 : i32
    %c0_i32_0 = arith.constant 0 : i32
    %c0_i32_1 = arith.constant 0 : i32
    return %c0_i32, %c0_i32_0 : i32, i32
  }
  func.func @transform_2(%arg0: i32) -> (i32, i32) {
    %c0_i32 = arith.constant 0 : i32
    %c0_i32_0 = arith.constant 0 : i32
    return %arg0, %c0_i32 : i32, i32
  }
}

</mosaic_0001>

<llo_original>
// kernel: tpu_custom_call.1
$region0: #{tpu_custom_call.1}
  #allocation0 [shape = 'u32[]', space=smem, size = 0x4, offset = 0x4, fixed_abs, tag = 'smem constant byte address 0x4 - core index']
  #allocation1 [shape = 'u32[144,128]{1,0:T(1,128)}', space=vmem, size = 0x12000, scoped, tag = 'internal scratch']
  %s0 = inlined_call_operand.hbm [shape: f32[4,128], index: 0, kind: input, shape index: {}]
  %s1 = inlined_call_operand.vmem [shape: f32[1,128], index: 1, kind: input, shape index: {}]
  %s2 = inlined_call_operand.hbm [shape: f32[4,128], index: 2, kind: output, shape index: {}]
  %s3 = sld [smem:[#allocation0]]
  $region22: #{tpu_custom_call.1} parent=0
    _
  %s5 = ssub.s32 1, %s3
  %s6 = scalar_select 0, %s5, %s3
  $region1: #{tpu_custom_call.1} parent=0
    #allocation2 [shape = 'u8[2048]{0}', space=vmem, size = 0x800, scoped, tag = 'input window, operand 0, single buffered']
    #allocation3 [shape = 's32[1]{0}', space=sflag, size = 0x4, scoped, tag = 'scoped memory for tpu_custom_call.1']
    #allocation4 [shape = 's32[1]{0}', space=sflag, size = 0x4, scoped, tag = 'scoped memory for tpu_custom_call.1']
    #allocation5 [shape = 'u8[2048]{0}', space=vmem, size = 0x800, scoped, tag = 'output window, operand 0, single buffered']
    %7 = vsyncpa [#allocation3], 0
    %8 = vsyncpa [#allocation4], 0
    // Predicated region
    $region2: #{tpu_custom_call.1} parent=1 // pred_check
      _
    $region3: #{tpu_custom_call.1} parent=1 // pred_check_branch
      %10 = sbr.rel (0) target = $region5
    $region4: #{tpu_custom_call.1} parent=1 // pred_region
      %s12 = ssub.s32 64, 64
      %13 = vsyncadd [#allocation3], %s12
      %s15 = sshll.u32 [#allocation2], 4
      %s16 = int_to_ptr.vmem [resolvable:$true] %s15
      %18 = dma.hbm_to_vmem [thread:$0]  %s0, 64, %s16, [#allocation3]
    $region5: #{tpu_custom_call.1} parent=1 // pred_fallthru
      _
    // Predicated region
    $region6: #{tpu_custom_call.1} parent=1 // pred_check
      _
    $region7: #{tpu_custom_call.1} parent=1 // pred_check_branch
      %20 = sbr.rel (0) target = $region9
    $region8: #{tpu_custom_call.1} parent=1 // pred_region
      _
    $region9: #{tpu_custom_call.1} parent=1 // pred_fallthru
      _
    // Predicated region
    $region10: #{tpu_custom_call.1} parent=1 // pred_check
      _
    $region11: #{tpu_custom_call.1} parent=1 // pred_check_branch
      %22 = sbr.rel (0) target = $region13
    $region12: #{tpu_custom_call.1} parent=1 // pred_region
      %23 = dma.done [#allocation3], 64
    $region13: #{tpu_custom_call.1} parent=1 // pred_fallthru
      _
    %v24 = vld [vmem:[#allocation2] sm:$0xf]
    %v25 = vld [vmem:[%s1] sm:$0x1]
    %v27 = vlaneseq
    %v28 = vshrl.u32 %v27, 7
    %v29 = vsub.s32 0, %v28
    %v30 = vrot.slane %v25, %v29
    %v32 = vmul.f32 %v24, %v30
    %33 = vst [vmem:[#allocation5] sm:$0xf] %v32
    // Predicated region
    $region14: #{tpu_custom_call.1} parent=1 // pred_check
      _
    $region15: #{tpu_custom_call.1} parent=1 // pred_check_branch
      %35 = sbr.rel (0) target = $region17
    $region16: #{tpu_custom_call.1} parent=1 // pred_region
      %s37 = ssub.s32 64, 64
      %38 = vsyncadd [#allocation4], %s37
      %s40 = sshll.u32 [#allocation5], 4
      %s41 = int_to_ptr.vmem [resolvable:$true] %s40
      %43 = dma.vmem_to_hbm [thread:$0]  %s41, 64, %s2, [#allocation4]
    $region17: #{tpu_custom_call.1} parent=1 // pred_fallthru
      _
    // Predicated region
    $region18: #{tpu_custom_call.1} parent=1 // pred_check
      _
    $region19: #{tpu_custom_call.1} parent=1 // pred_check_branch
      %45 = sbr.rel (0) target = $region21
    $region20: #{tpu_custom_call.1} parent=1 // pred_region
      %46 = dma.done [#allocation4], 64
    $region21: #{tpu_custom_call.1} parent=1 // pred_fallthru
      _
    %47 = vsyncpa [#allocation3], 1
    %48 = vsyncpa [#allocation4], 1

</llo_original>
